<compile_context>
chip_gen: v7x
topology: tpu7x:2x2x1
jax: 0.10.0
libtpu: 0.0.40
codegen_flags: <defaults>
</compile_context>

<pallas_src>
import functools
import math

import jax
import jax.numpy as jnp
from jax import lax
from jax.experimental import pallas as pl
from jax.experimental.pallas import tpu as pltpu


def _round_up(x, m):
    return ((x + m - 1) // m) * m


def _vmem_capacity_bytes():
    """Physical VMEM per TensorCore (generation aware, with a v7x-safe fallback)."""
    try:
        return int(pltpu.get_tpu_info().vmem_capacity_bytes)
    except Exception:
        return 64 * 1024 * 1024


def _plan(N, H, W, Cin, Cout, itemsize):
    """Static tiling plan (all Python ints)."""
    # Halo block (the >=2 rows below a chunk), lane-padded to a 128 multiple.
    halo = 128 * ((2 * W + 127) // 128)
    # Minimum sub-chunk rows so sub-chunks start on row boundaries AND their
    # lane extent is a multiple of both 128 and the halo block size.
    rows_align = math.lcm(W, halo) // W
    # vreg-friendly sub-chunk width (lanes): ~512 for 16-bit, ~256 for f32.
    lane_target = 512 if itemsize <= 2 else 256
    rc = rows_align * max(1, lane_target // (rows_align * W))
    rc = min(rc, rows_align * ((H + rows_align - 1) // rows_align))
    mci = rc * W

    # Channel grouping keeps the (9*grp, mci) matmul operand vreg-sized.
    g_max = max(1, (96 * 1024) // (9 * mci * itemsize))
    if Cin <= g_max:
        grp = Cin
    else:
        grp = 1
        for d in range(1, g_max + 1):
            if Cin % d == 0:
                grp = d
        if grp < max(1, g_max // 2):   # awkward (e.g. prime) Cin: pad channels
            grp = g_max
    n_grp = (Cin + grp - 1) // grp
    cin_p = n_grp * grp
    cout_p = _round_up(Cout, 8)

    # Rows per grid step: target multi-MiB (double-buffered) blocks, but never
    # more rows than the image provides.
    vmem_cap = _vmem_capacity_bytes()
    vmem_limit = min((vmem_cap * 3) // 4, 112 * 1024 * 1024)
    per_rc = mci * (_round_up(cin_p, 8) * itemsize + cout_p * 4)  # one buffer / sub-chunk
    target = max(per_rc, min(8 * 1024 * 1024, vmem_limit // 6))
    n_inner = max(1, min(32, target // per_rc, (H + rc - 1) // rc))
    # v7x megacore: keep at least 2 grid steps when possible.
    while N * (_round_up(H, rc * n_inner) // (rc * n_inner)) < 2 and n_inner > 1:
        n_inner = (n_inner + 1) // 2
    ch = rc * n_inner
    h_eff = _round_up(H, ch)
    n_chunks = h_eff // ch
    # Padded input rows: 1 reflect row on top, reflect row + zero spares below
    # so the last chunk's lane-padded halo block stays in bounds.
    rows_pad = h_eff + max(2, (halo + W - 1) // W)
    return dict(halo=halo, rc=rc, mci=mci, grp=grp, n_grp=n_grp, cin_p=cin_p,
                cout_p=cout_p, n_inner=n_inner, ch=ch, h_eff=h_eff,
                n_chunks=n_chunks, rows_pad=rows_pad, vmem_limit=vmem_limit)


def _conv3x3_kernel(xb_ref, xh_ref, w_ref, b_ref, o_ref, *,
                    width, mci, n_inner, grp, n_grp, use_refl):
    """One (image, row-chunk) grid step.

    xb_ref: (cin_p, CH*W)          chunk body: CH height-padded rows, row-major flat
    xh_ref: (cin_p, HALO)          the next >=2 rows below the chunk (lane-padded)
    w_ref:  (cout_p, n_grp*9*grp)  weights, K ordered (group, kh, kw, ci-in-group)
    b_ref:  (cout_p, 1)            bias (f32)
    o_ref:  (cout_p, CH*W)         output rows of the chunk (lane-dense, NCHW order)
    """
    body_len = xb_ref.shape[-1]
    rc = mci // width
    bias = b_ref[...]                                        # (cout_p, 1) f32

    # Column masks for the width-edge fix-up.  Sub-chunks start on row
    # boundaries, so a single static mask serves every sub-chunk.
    onerow = lax.broadcasted_iota(jnp.int32, (grp, width), 1)
    col = jnp.tile(onerow, (1, rc))                          # (grp, mci)
    is_w0 = col == 0
    is_wlast = col == width - 1

    # Per-group weight slices, hoisted out of the unrolled loops (tiny).
    wgs = [w_ref[:, g * 9 * grp:(g + 1) * 9 * grp] for g in range(n_grp)]

    def load(g, start):
        """grp channel rows, flat lanes [start, start+mci); static offsets,
        stitched across the body/halo boundary for the trailing taps."""
        r0, r1 = g * grp, (g + 1) * grp
        end = start + mci
        if end <= body_len:
            return xb_ref[r0:r1, start:end]
        if start >= body_len:
            return xh_ref[r0:r1, start - body_len:end - body_len]
        return jnp.concatenate(
            [xb_ref[r0:r1, start:body_len], xh_ref[r0:r1, :end - body_len]], axis=1)

    # Static unroll over sub-chunks: every slice offset is a compile-time
    # constant, stores are 128-lane aligned, and each matmul operand stays
    # vreg-sized (no block-sized value is ever live in registers).
    for i in range(n_inner):
        base = i * mci
        acc = None
        for g in range(n_grp):
            taps = []
            for kh in range(3):
                ctr = load(g, base + kh * width)
                # In-chunk +-1 lane shifts.  The wrapped element is only ever
                # used at positions the edge fix-up below overwrites.
                sft_r = jnp.concatenate([ctr[:, :1], ctr[:, :-1]], axis=1)  # [p] = ctr[p-1]
                sft_l = jnp.concatenate([ctr[:, 1:], ctr[:, -1:]], axis=1)  # [p] = ctr[p+1]
                if use_refl:           # reflection: col -1 -> 1, col W -> W-2
                    left = jnp.where(is_w0, sft_l, sft_r)
                    right = jnp.where(is_wlast, sft_r, sft_l)
                else:                  # zero padding
                    zero = jnp.zeros_like(ctr)
                    left = jnp.where(is_w0, zero, sft_r)
                    right = jnp.where(is_wlast, zero, sft_l)
                taps += [left, ctr, right]                   # kw = 0, 1, 2
            # One fused K = 9*grp dot per group (single MXU stream) instead of
            # 9 tiny per-tap dots.
            xt = jnp.concatenate(taps, axis=0)               # (9*grp, mci)
            part = jnp.dot(wgs[g], xt, preferred_element_type=jnp.float32)
            acc = part if acc is None else acc + part
        o_ref[:, base:base + mci] = (acc + bias).astype(o_ref.dtype)


@functools.partial(jax.jit, static_argnames=("compute_dtype", "use_refl"))
def conv3x3(x, weight, bias, *, compute_dtype=jnp.bfloat16, use_refl=True):
    """ReflectionPad2d(1) (or ZeroPad2d(1)) + Conv2d(Cin, Cout, 3) on NCHW input.

    Matches PyTorch `Conv3x3.forward`.  The matmul operands run in
    `compute_dtype` (bfloat16 by default: native MXU rate on v6e/v7x and half
    the HBM read traffic); accumulation, bias add and the stored output are
    float32.  Pass compute_dtype=jnp.float32 for exact fp32 math.
    """
    N, Cin, H, W = x.shape
    Cout = weight.shape[0]
    cd = jnp.dtype(compute_dtype)
    p = _plan(N, H, W, Cin, Cout, cd.itemsize)

    # ---- input: reflection-pad the height (+ spare rows for the lane-padded
    #      halo block), optionally pad channel groups, cast, flatten spatial.
    #      Width is NOT padded: the kw halo is rebuilt inside the kernel.
    if use_refl:
        top = x[:, :, 1:2, :]
        bot = x[:, :, H - 2:H - 1, :]
    else:
        top = jnp.zeros((N, Cin, 1, W), x.dtype)
        bot = jnp.zeros((N, Cin, 1, W), x.dtype)
    spare = jnp.zeros((N, Cin, p["rows_pad"] - H - 2, W), x.dtype)
    xp = jnp.concatenate([top, x, bot, spare], axis=2)
    if p["cin_p"] > Cin:
        xp = jnp.concatenate(
            [xp, jnp.zeros((N, p["cin_p"] - Cin, p["rows_pad"], W), x.dtype)], axis=1)
    xp = xp.astype(cd).reshape(N, p["cin_p"], p["rows_pad"] * W)

    # ---- weights: OIHW -> (Cout_p, n_grp * 9 * grp), K = (group, kh, kw, ci).
    wk = weight
    if p["cin_p"] > Cin:
        wk = jnp.concatenate(
            [wk, jnp.zeros((Cout, p["cin_p"] - Cin, 3, 3), weight.dtype)], axis=1)
    wk = wk.reshape(Cout, p["n_grp"], p["grp"], 3, 3)
    wk = wk.transpose(0, 1, 3, 4, 2).reshape(Cout, p["n_grp"] * 9 * p["grp"])
    if p["cout_p"] > Cout:
        wk = jnp.concatenate(
            [wk, jnp.zeros((p["cout_p"] - Cout, wk.shape[1]), weight.dtype)], axis=0)
    wk = wk.astype(cd)
    bk = jnp.pad(bias.astype(jnp.float32),
                 (0, p["cout_p"] - Cout)).reshape(p["cout_p"], 1)

    ch_w = p["ch"] * W
    halo_stride = ch_w // p["halo"]
    kernel = functools.partial(
        _conv3x3_kernel, width=W, mci=p["mci"], n_inner=p["n_inner"],
        grp=p["grp"], n_grp=p["n_grp"], use_refl=use_refl)

    out = pl.pallas_call(
        kernel,
        out_shape=jax.ShapeDtypeStruct((N, p["cout_p"], p["h_eff"] * W), x.dtype),
        grid=(N, p["n_chunks"]),
        in_specs=[
            # Chunk body: CH height-padded rows, flattened row-major.
            pl.BlockSpec((None, p["cin_p"], ch_w), lambda n, c: (n, 0, c)),
            # 2-row halo below the chunk (lane-padded), same array, small block
            # -> overlapping windows without any HBM re-materialization.
            pl.BlockSpec((None, p["cin_p"], p["halo"]),
                         lambda n, c: (n, 0, (c + 1) * halo_stride)),
            # Weights / bias: grid-invariant index_map -> DMA'd once, resident.
            # (pl.Buffered(1) skipped: they are KB-sized, saving is negligible.)
            pl.BlockSpec((p["cout_p"], wk.shape[1]), lambda n, c: (0, 0)),
            pl.BlockSpec((p["cout_p"], 1), lambda n, c: (0, 0)),
        ],
        out_specs=pl.BlockSpec((None, p["cout_p"], ch_w), lambda n, c: (n, 0, c)),
        compiler_params=pltpu.CompilerParams(
            dimension_semantics=("parallel", "parallel"),
            vmem_limit_bytes=p["vmem_limit"],
        ),
    )(xp, xp, wk, bk)

    # (N, Cout_p, H_eff*W) is already NCHW row-major; drop padding (a no-op
    # when Cout is a multiple of 8 and H a multiple of the chunk height).
    out = out.reshape(N, p["cout_p"], p["h_eff"], W)[:, :Cout, :H, :]
    return out


def _reference_conv3x3(x, weight, bias, use_refl=True):
    """Pure-JAX reference (lax conv, highest precision)."""
    mode = "reflect" if use_refl else "constant"
    xp = jnp.pad(x, ((0, 0), (0, 0), (1, 1), (1, 1)), mode=mode)
    out = lax.conv_general_dilated(
        xp, weight, window_strides=(1, 1), padding="VALID",
        dimension_numbers=("NCHW", "OIHW", "NCHW"),
        precision=lax.Precision.HIGHEST)
    return out + bias.reshape(1, -1, 1, 1)


if __name__ == "__main__":
    key = jax.random.PRNGKey(0)

    def make(k, N, Cin, Cout, H, W):
        kx, kw, kb = jax.random.split(k, 3)
        x = jax.random.normal(kx, (N, Cin, H, W), jnp.float32)
        w = jax.random.normal(kw, (Cout, Cin, 3, 3), jnp.float32) / jnp.sqrt(9.0 * Cin)
        b = 0.1 * jax.random.normal(kb, (Cout,), jnp.float32)
        return x, w, b

    k1, k2 = jax.random.split(key)

    # Small shapes consistent with Conv3x3(in_channels=4, out_channels=8).
    x, w, b = make(k1, N=2, Cin=4, Cout=8, H=16, W=16)
    ref = _reference_conv3x3(x, w, b)

    out = conv3x3(x, w, b)                      # default: bf16 operands, f32 accum
    jax.block_until_ready(out)
    assert out.shape == ref.shape, out.shape
    assert jnp.allclose(out, ref, atol=5e-2, rtol=5e-2), "bf16 path mismatch vs ref"

    out32 = conv3x3(x, w, b, compute_dtype=jnp.float32)
    jax.block_until_ready(out32)
    assert jnp.allclose(out32, ref, atol=1e-3, rtol=1e-3), "f32 path mismatch vs ref"

    out_zero = conv3x3(x, w, b, compute_dtype=jnp.float32, use_refl=False)
    ref_zero = _reference_conv3x3(x, w, b, use_refl=False)
    jax.block_until_ready(out_zero)
    assert jnp.allclose(out_zero, ref_zero, atol=1e-3, rtol=1e-3), "zero-pad mismatch"

    # Larger, odd-shaped case: exercises the multi-sub-chunk unroll, the
    # body/halo stitch, H padded up to the chunk height and Cout_p > Cout.
    x2, w2, b2 = make(k2, N=1, Cin=6, Cout=12, H=40, W=24)
    ref2 = _reference_conv3x3(x2, w2, b2)
    out2 = conv3x3(x2, w2, b2)
    jax.block_until_ready(out2)
    assert out2.shape == ref2.shape, out2.shape
    assert jnp.allclose(out2, ref2, atol=5e-2, rtol=5e-2), "bf16 path mismatch (large)"

    print("KERNEL_OK")
</pallas_src>

<mosaic_0001>
module attributes {stable_mosaic.version = 11 : i64} {
  func.func @_conv3x3_kernel(%arg0: i32, %arg1: i32, %arg2: memref<1x4x256xbf16, #tpu.memory_space<vmem>>, %arg3: memref<1x4x128xbf16, #tpu.memory_space<vmem>>, %arg4: memref<8x36xbf16, #tpu.memory_space<vmem>>, %arg5: memref<8x1xf32, #tpu.memory_space<vmem>>, %arg6: memref<1x8x256xf32, #tpu.memory_space<vmem>>) attributes {dimension_semantics = [#tpu.dimension_semantics<parallel>, #tpu.dimension_semantics<parallel>], iteration_bounds = array<i64: 2, 1>, scalar_prefetch = 0 : i64, scratch_operands = 0 : i64, tpu.core_type = #tpu.core_type<tc>, window_params = [{transform_indices = @transform_0, window_bounds = array<i64: 1, 4, 256>}, {transform_indices = @transform_1, window_bounds = array<i64: 1, 4, 128>}, {pipeline_mode = #tpu.pipeline_mode<synchronous>, transform_indices = @transform_2, window_bounds = array<i64: 8, 36>}, {pipeline_mode = #tpu.pipeline_mode<synchronous>, transform_indices = @transform_3, window_bounds = array<i64: 8, 1>}, {transform_indices = @transform_4, window_bounds = array<i64: 1, 8, 256>}]} {
    %c0 = arith.constant 0 : index
    %c0_0 = arith.constant 0 : index
    %0 = vector.load %arg5[%c0, %c0_0] : memref<8x1xf32, #tpu.memory_space<vmem>>, vector<8x1xf32>
    %1 = tpu.iota {dimensions = array<i32: 1>} : vector<4x16xi32>
    %2 = tpu.concatenate %1, %1, %1, %1, %1, %1, %1, %1, %1, %1, %1, %1, %1, %1, %1, %1 in 1 : vector<4x16xi32>, vector<4x16xi32>, vector<4x16xi32>, vector<4x16xi32>, vector<4x16xi32>, vector<4x16xi32>, vector<4x16xi32>, vector<4x16xi32>, vector<4x16xi32>, vector<4x16xi32>, vector<4x16xi32>, vector<4x16xi32>, vector<4x16xi32>, vector<4x16xi32>, vector<4x16xi32>, vector<4x16xi32> -> vector<4x256xi32>
    %c0_i32 = arith.constant 0 : i32
    %3 = vector.broadcast %c0_i32 : i32 to vector<4x256xi32>
    %4 = arith.cmpi eq, %2, %3 : vector<4x256xi32>
    %c15_i32 = arith.constant 15 : i32
    %5 = vector.broadcast %c15_i32 : i32 to vector<4x256xi32>
    %6 = arith.cmpi eq, %2, %5 : vector<4x256xi32>
    %c0_1 = arith.constant 0 : index
    %c0_2 = arith.constant 0 : index
    %7 = vector.load %arg4[%c0_1, %c0_2] : memref<8x36xbf16, #tpu.memory_space<vmem>>, vector<8x36xbf16>
    %c0_3 = arith.constant 0 : index
    %c0_4 = arith.constant 0 : index
    %c0_5 = arith.constant 0 : index
    %8 = vector.load %arg2[%c0_3, %c0_4, %c0_5] : memref<1x4x256xbf16, #tpu.memory_space<vmem>>, vector<1x4x256xbf16>
    %9 = vector.shape_cast %8 : vector<1x4x256xbf16> to vector<4x256xbf16>
    %10 = vector.extract_strided_slice %9 {offsets = [0, 0], sizes = [4, 1], strides = [1, 1]} : vector<4x256xbf16> to vector<4x1xbf16>
    %11 = vector.extract_strided_slice %9 {offsets = [0, 0], sizes = [4, 255], strides = [1, 1]} : vector<4x256xbf16> to vector<4x255xbf16>
    %12 = tpu.concatenate %10, %11 in 1 : vector<4x1xbf16>, vector<4x255xbf16> -> vector<4x256xbf16>
    %13 = vector.extract_strided_slice %9 {offsets = [0, 1], sizes = [4, 255], strides = [1, 1]} : vector<4x256xbf16> to vector<4x255xbf16>
    %14 = vector.extract_strided_slice %9 {offsets = [0, 255], sizes = [4, 1], strides = [1, 1]} : vector<4x256xbf16> to vector<4x1xbf16>
    %15 = tpu.concatenate %13, %14 in 1 : vector<4x255xbf16>, vector<4x1xbf16> -> vector<4x256xbf16>
    %16 = arith.select %4, %15, %12 : vector<4x256xi1>, vector<4x256xbf16>
    %17 = arith.select %6, %12, %15 : vector<4x256xi1>, vector<4x256xbf16>
    %c0_6 = arith.constant 0 : index
    %c0_7 = arith.constant 0 : index
    %c16 = arith.constant 16 : index
    %18 = vector.load %arg2[%c0_6, %c0_7, %c16] : memref<1x4x256xbf16, #tpu.memory_space<vmem>>, vector<1x4x240xbf16>
    %19 = vector.shape_cast %18 : vector<1x4x240xbf16> to vector<4x240xbf16>
    %c0_8 = arith.constant 0 : index
    %c0_9 = arith.constant 0 : index
    %c0_10 = arith.constant 0 : index
    %20 = vector.load %arg3[%c0_8, %c0_9, %c0_10] : memref<1x4x128xbf16, #tpu.memory_space<vmem>>, vector<1x4x16xbf16>
    %21 = vector.shape_cast %20 : vector<1x4x16xbf16> to vector<4x16xbf16>
    %22 = tpu.concatenate %19, %21 in 1 : vector<4x240xbf16>, vector<4x16xbf16> -> vector<4x256xbf16>
    %23 = vector.extract_strided_slice %22 {offsets = [0, 0], sizes = [4, 1], strides = [1, 1]} : vector<4x256xbf16> to vector<4x1xbf16>
    %24 = vector.extract_strided_slice %22 {offsets = [0, 0], sizes = [4, 255], strides = [1, 1]} : vector<4x256xbf16> to vector<4x255xbf16>
    %25 = tpu.concatenate %23, %24 in 1 : vector<4x1xbf16>, vector<4x255xbf16> -> vector<4x256xbf16>
    %26 = vector.extract_strided_slice %22 {offsets = [0, 1], sizes = [4, 255], strides = [1, 1]} : vector<4x256xbf16> to vector<4x255xbf16>
    %27 = vector.extract_strided_slice %22 {offsets = [0, 255], sizes = [4, 1], strides = [1, 1]} : vector<4x256xbf16> to vector<4x1xbf16>
    %28 = tpu.concatenate %26, %27 in 1 : vector<4x255xbf16>, vector<4x1xbf16> -> vector<4x256xbf16>
    %29 = arith.select %4, %28, %25 : vector<4x256xi1>, vector<4x256xbf16>
    %30 = arith.select %6, %25, %28 : vector<4x256xi1>, vector<4x256xbf16>
    %c0_11 = arith.constant 0 : index
    %c0_12 = arith.constant 0 : index
    %c32 = arith.constant 32 : index
    %31 = vector.load %arg2[%c0_11, %c0_12, %c32] : memref<1x4x256xbf16, #tpu.memory_space<vmem>>, vector<1x4x224xbf16>
    %32 = vector.shape_cast %31 : vector<1x4x224xbf16> to vector<4x224xbf16>
    %c0_13 = arith.constant 0 : index
    %c0_14 = arith.constant 0 : index
    %c0_15 = arith.constant 0 : index
    %33 = vector.load %arg3[%c0_13, %c0_14, %c0_15] : memref<1x4x128xbf16, #tpu.memory_space<vmem>>, vector<1x4x32xbf16>
    %34 = vector.shape_cast %33 : vector<1x4x32xbf16> to vector<4x32xbf16>
    %35 = tpu.concatenate %32, %34 in 1 : vector<4x224xbf16>, vector<4x32xbf16> -> vector<4x256xbf16>
    %36 = vector.extract_strided_slice %35 {offsets = [0, 0], sizes = [4, 1], strides = [1, 1]} : vector<4x256xbf16> to vector<4x1xbf16>
    %37 = vector.extract_strided_slice %35 {offsets = [0, 0], sizes = [4, 255], strides = [1, 1]} : vector<4x256xbf16> to vector<4x255xbf16>
    %38 = tpu.concatenate %36, %37 in 1 : vector<4x1xbf16>, vector<4x255xbf16> -> vector<4x256xbf16>
    %39 = vector.extract_strided_slice %35 {offsets = [0, 1], sizes = [4, 255], strides = [1, 1]} : vector<4x256xbf16> to vector<4x255xbf16>
    %40 = vector.extract_strided_slice %35 {offsets = [0, 255], sizes = [4, 1], strides = [1, 1]} : vector<4x256xbf16> to vector<4x1xbf16>
    %41 = tpu.concatenate %39, %40 in 1 : vector<4x255xbf16>, vector<4x1xbf16> -> vector<4x256xbf16>
    %42 = arith.select %4, %41, %38 : vector<4x256xi1>, vector<4x256xbf16>
    %43 = arith.select %6, %38, %41 : vector<4x256xi1>, vector<4x256xbf16>
    %44 = tpu.concatenate %16, %9, %17, %29, %22, %30, %42, %35, %43 in 0 : vector<4x256xbf16>, vector<4x256xbf16>, vector<4x256xbf16>, vector<4x256xbf16>, vector<4x256xbf16>, vector<4x256xbf16>, vector<4x256xbf16>, vector<4x256xbf16>, vector<4x256xbf16> -> vector<36x256xbf16>
    %cst = arith.constant dense<0.000000e+00> : vector<8x256xf32>
    %45 = tpu.matmul %7, %44, %cst {dimension_numbers = #tpu.dot_dimension_numbers<[1], [0], [0], [1], [0, 0, 1, 1], [], []>} : vector<8x36xbf16>, vector<36x256xbf16>, vector<8x256xf32> -> vector<8x256xf32>
    %46 = vector.broadcast %0 : vector<8x1xf32> to vector<8x256xf32>
    %47 = arith.addf %45, %46 : vector<8x256xf32>
    %c0_16 = arith.constant 0 : index
    %c0_17 = arith.constant 0 : index
    %c0_18 = arith.constant 0 : index
    %48 = vector.load %arg6[%c0_16, %c0_17, %c0_18] : memref<1x8x256xf32, #tpu.memory_space<vmem>>, vector<1x8x256xf32>
    %49 = vector.shape_cast %48 : vector<1x8x256xf32> to vector<8x256xf32>
    %50 = vector.shape_cast %47 : vector<8x256xf32> to vector<1x8x256xf32>
    tpu.vector_store %arg6[%c0_16, %c0_17, %c0_18], %50 {strides = array<i32>} : memref<1x8x256xf32, #tpu.memory_space<vmem>>, vector<1x8x256xf32>,
    return
  }
  func.func @transform_0(%arg0: i32, %arg1: i32) -> (i32, i32, i32) {
    %c0_i32 = arith.constant 0 : i32
    %c0_i32_0 = arith.constant 0 : i32
    return %arg0, %c0_i32, %arg1 : i32, i32, i32
  }
  func.func @transform_1(%arg0: i32, %arg1: i32) -> (i32, i32, i32) {
    %c1_i32 = arith.constant 1 : i32
    %0 = arith.addi %arg1, %c1_i32 : i32
    %c2_i32 = arith.constant 2 : i32
    %1 = arith.muli %0, %c2_i32 : i32
    %c0_i32 = arith.constant 0 : i32
    %c0_i32_0 = arith.constant 0 : i32
    return %arg0, %c0_i32, %1 : i32, i32, i32
  }
  func.func @transform_2(%arg0: i32, %arg1: i32) -> (i32, i32) {
    %c0_i32 = arith.constant 0 : i32
    %c0_i32_0 = arith.constant 0 : i32
    %c0_i32_1 = arith.constant 0 : i32
    return %c0_i32, %c0_i32_0 : i32, i32
  }
  func.func @transform_3(%arg0: i32, %arg1: i32) -> (i32, i32) {
    %c0_i32 = arith.constant 0 : i32
    %c0_i32_0 = arith.constant 0 : i32
    %c0_i32_1 = arith.constant 0 : i32
    return %c0_i32, %c0_i32_0 : i32, i32
  }
  func.func @transform_4(%arg0: i32, %arg1: i32) -> (i32, i32, i32) {
    %c0_i32 = arith.constant 0 : i32
    %c0_i32_0 = arith.constant 0 : i32
    return %arg0, %c0_i32, %arg1 : i32, i32, i32
  }
}

</mosaic_0001>

<llo_original>
// kernel: conv3x3.1
$region0: #{conv3x3.1}
  #allocation0 [shape = 'u32[]', space=smem, size = 0x4, offset = 0x4, fixed_abs, tag = 'smem constant byte address 0x4 - core index']
  #allocation1 [shape = 'u32[144,128]{1,0:T(1,128)}', space=vmem, size = 0x12000, scoped, tag = 'internal scratch']
  %s0 = inlined_call_operand.vmem [shape: bf16[2,4,384], index: 0, kind: input, shape index: {}, may-alias: {0,1}]
  %s1 = inlined_call_operand.vmem [shape: bf16[2,4,384], index: 1, kind: input, shape index: {}, may-alias: {0,1}]
  %s2 = inlined_call_operand.vmem [shape: bf16[8,36], index: 2, kind: input, shape index: {}]
  %s3 = inlined_call_operand.vmem [shape: f32[8,1], index: 3, kind: input, shape index: {}]
  %s4 = inlined_call_operand.vmem [shape: f32[2,8,256], index: 4, kind: output, shape index: {}]
  %s5 = sld [smem:[#allocation0]]
  $region49: #{conv3x3.1} parent=0
    _
  %s7 = ssub.s32 1, %s5
  %s8 = scalar_select 0, %s7, %s5
  loop: start=0, step=1, limit=4
  $region2: #{conv3x3.1} parent=0 // loop_pre_header
    _
  $region3: #{conv3x3.1} parent=0 // loop_header
    %s10 = sphi 0, %s14
    %p11 = scmp.ge.s32.totalorder %s10, 4
    %s17 = sphi 0, %s29
    %s18 = sphi 0, %s25
    %s19 = sphi 0, %s17
    %s20 = sphi 0, %s18
    %s21 = sphi 0, %s19
    %s22 = sphi 0, %s20
    %s34 = sphi 0, %s36
    %s37 = sphi 0, %s34
    %s38 = sphi 0, %s37
    %s54 = sphi 0, %s38
    %s66 = sphi 0, %s68
    %s69 = sphi 0, %s66
    %s70 = sphi 0, %s69
    %s86 = sphi 0, %s70
    %s90 = sphi 0, %s90
    %s92 = sphi 0, %s90
    %s93 = sphi 0, %s92
    %s107 = sphi 0, %s93
    %s111 = sphi 0, %s111
    %s113 = sphi 0, %s111
    %s114 = sphi 0, %s113
    %s128 = sphi 0, %s114
    %s136 = sphi 0, %s138
    %s139 = sphi 0, %s136
    %s140 = sphi 0, %s139
    %s156 = sphi 0, %s140
  $region4: #{conv3x3.1} parent=0 // loop_header_branch
    %13 = sbr.rel (%p11) target = $region8
  $region5: #{conv3x3.1} parent=0 // loop_body
    %s15 = ssub.s32 %s10, 1
    %s16 = ssub.s32 %s10, 2
    %s23 = sadd.s32 1, %s18
    %p24 = scmp.ge.s32.totalorder %s23, 1
    %s25 = scalar_select %p24, 0, %s23
    %s26 = sadd.s32 1, %s17
    %s27 = scalar_select %p24, %s26, %s17
    %p28 = scmp.ge.s32.totalorder %s27, 2
    %s29 = scalar_select %p28, 0, %s27
    %s30 = ssub.s32 %s17, %s29
    %s31 = ssub.s32 %s18, %s25
    %s32 = sor.u32 %s30, %s31
    %p33 = scmp.eq.s32.totalorder %s32, 0
    %s35 = sadd.s32 %s34, 1
    %s36 = scalar_select %p33, %s34, %s35
    %p39 = pneg %p33
    %p40 = scmp.eq.s32.totalorder %s10, 1
    %p41 = por %p39, %p40
    %p42 = scmp.ne.s32.totalorder %s34, %s37
    %p43 = scmp.eq.s32.totalorder %s10, 0
    %p44 = por %p42, %p43
    %p45 = scmp.ne.s32.totalorder %s34, %s37
    %p46 = scmp.eq.s32.totalorder %s15, 1
    %p47 = por %p45, %p46
    %p48 = scmp.ne.s32.totalorder %s37, %s38
    %p49 = scmp.eq.s32.totalorder %s15, 0
    %p50 = por %p48, %p49
    %p51 = scmp.ne.s32.totalorder %s37, %s38
    %p52 = scmp.eq.s32.totalorder %s16, 1
    %p53 = por %p51, %p52
    %p55 = scmp.ne.s32.totalorder %s38, %s54
    %p56 = scmp.eq.s32.totalorder %s16, 0
    %p57 = por %p55, %p56
    %s58 = sadd.s32 %s18, 1
    %s59 = smul.u32 %s58, 2
    %s60 = sadd.s32 %s25, 1
    %s61 = smul.u32 %s60, 2
    %s62 = ssub.s32 %s17, %s29
    %s63 = ssub.s32 %s59, %s61
    %s64 = sor.u32 %s62, %s63
    %p65 = scmp.eq.s32.totalorder %s64, 0
    %s67 = sadd.s32 %s66, 1
    %s68 = scalar_select %p65, %s66, %s67
    %p71 = pneg %p65
    %p72 = scmp.eq.s32.totalorder %s10, 1
    %p73 = por %p71, %p72
    %p74 = scmp.ne.s32.totalorder %s66, %s69
    %p75 = scmp.eq.s32.totalorder %s10, 0
    %p76 = por %p74, %p75
    %p77 = scmp.ne.s32.totalorder %s66, %s69
    %p78 = scmp.eq.s32.totalorder %s15, 1
    %p79 = por %p77, %p78
    %p80 = scmp.ne.s32.totalorder %s69, %s70
    %p81 = scmp.eq.s32.totalorder %s15, 0
    %p82 = por %p80, %p81
    %p83 = scmp.ne.s32.totalorder %s69, %s70
    %p84 = scmp.eq.s32.totalorder %s16, 1
    %p85 = por %p83, %p84
    %p87 = scmp.ne.s32.totalorder %s70, %s86
    %p88 = scmp.eq.s32.totalorder %s16, 0
    %p89 = por %p87, %p88
    %s91 = sadd.s32 %s90, 1
    %p94 = scmp.eq.s32.totalorder %s10, 1
    %p95 = scmp.ne.s32.totalorder %s90, %s92
    %p96 = scmp.eq.s32.totalorder %s10, 0
    %p97 = por %p95, %p96
    %p98 = scmp.ne.s32.totalorder %s90, %s92
    %p99 = scmp.eq.s32.totalorder %s15, 1
    %p100 = por %p98, %p99
    %p101 = scmp.ne.s32.totalorder %s92, %s93
    %p102 = scmp.eq.s32.totalorder %s15, 0
    %p103 = por %p101, %p102
    %p104 = scmp.ne.s32.totalorder %s92, %s93
    %p105 = scmp.eq.s32.totalorder %s16, 1
    %p106 = por %p104, %p105
    %p108 = scmp.ne.s32.totalorder %s93, %s107
    %p109 = scmp.eq.s32.totalorder %s16, 0
    %p110 = por %p108, %p109
    %s112 = sadd.s32 %s111, 1
    %p115 = scmp.eq.s32.totalorder %s10, 1
    %p116 = scmp.ne.s32.totalorder %s111, %s113
    %p117 = scmp.eq.s32.totalorder %s10, 0
    %p118 = por %p116, %p117
    %p119 = scmp.ne.s32.totalorder %s111, %s113
    %p120 = scmp.eq.s32.totalorder %s15, 1
    %p121 = por %p119, %p120
    %p122 = scmp.ne.s32.totalorder %s113, %s114
    %p123 = scmp.eq.s32.totalorder %s15, 0
    %p124 = por %p122, %p123
    %p125 = scmp.ne.s32.totalorder %s113, %s114
    %p126 = scmp.eq.s32.totalorder %s16, 1
    %p127 = por %p125, %p126
    %p129 = scmp.ne.s32.totalorder %s114, %s128
    %p130 = scmp.eq.s32.totalorder %s16, 0
    %p131 = por %p129, %p130
    %s132 = ssub.s32 %s17, %s29
    %s133 = ssub.s32 %s18, %s25
    %s134 = sor.u32 %s132, %s133
    %p135 = scmp.eq.s32.totalorder %s134, 0
    %s137 = sadd.s32 %s136, 1
    %s138 = scalar_select %p135, %s136, %s137
    %p141 = pneg %p135
    %p142 = scmp.eq.s32.totalorder %s10, 1
    %p143 = por %p141, %p142
    %p144 = scmp.ne.s32.totalorder %s136, %s139
    %p145 = scmp.eq.s32.totalorder %s10, 0
    %p146 = por %p144, %p145
    %p147 = scmp.ne.s32.totalorder %s136, %s139
    %p148 = scmp.eq.s32.totalorder %s15, 1
    %p149 = por %p147, %p148
    %p150 = scmp.ne.s32.totalorder %s139, %s140
    %p151 = scmp.eq.s32.totalorder %s15, 0
    %p152 = por %p150, %p151
    %p153 = scmp.ne.s32.totalorder %s139, %s140
    %p154 = scmp.eq.s32.totalorder %s16, 1
    %p155 = por %p153, %p154
    %p157 = scmp.ne.s32.totalorder %s140, %s156
    %p158 = scmp.eq.s32.totalorder %s16, 0
    %p159 = por %p157, %p158
    %p160 = scmp.le.s32.totalorder 1, %s10
    %p161 = scmp.lt.s32.totalorder %s10, 3
    %p162 = pnand %p160, %p161
    %p163 = pneg %p162
    // Predicated region
    $region9: #{conv3x3.1} parent=5 // pred_check
      _
    $region10: #{conv3x3.1} parent=5 // pred_check_branch
      %165 = sbr.rel (%p162) target = $region12
    $region11: #{conv3x3.1} parent=5 // pred_region
      %s166 = ssub.s32 %s10, 1
      // Predicated region
      $region13: #{conv3x3.1} parent=11 // pred_check
        %p167 = pneg %p103
      $region14: #{conv3x3.1} parent=11 // pred_check_branch
        %169 = sbr.rel (%p167) target = $region16
      $region15: #{conv3x3.1} parent=11 // pred_region
        _
      $region16: #{conv3x3.1} parent=11 // pred_fallthru
        _
      // Predicated region
      $region17: #{conv3x3.1} parent=11 // pred_check
        %p170 = pneg %p124
      $region18: #{conv3x3.1} parent=11 // pred_check_branch
        %172 = sbr.rel (%p170) target = $region20
      $region19: #{conv3x3.1} parent=11 // pred_region
        _
      $region20: #{conv3x3.1} parent=11 // pred_fallthru
        _
    $region12: #{conv3x3.1} parent=5 // pred_fallthru
      _
    %p173 = scmp.lt.s32.totalorder %s10, 2
    // Predicated region
    $region21: #{conv3x3.1} parent=5 // pred_check
      %p174 = pneg %p173
    $region22: #{conv3x3.1} parent=5 // pred_check_branch
      %176 = sbr.rel (%p174) target = $region24
    $region23: #{conv3x3.1} parent=5 // pred_region
      // Predicated region
      $region25: #{conv3x3.1} parent=23 // pred_check
        %p177 = pneg %p44
      $region26: #{conv3x3.1} parent=23 // pred_check_branch
        %179 = sbr.rel (%p177) target = $region28
      $region27: #{conv3x3.1} parent=23 // pred_region
        %s180 = smul.u32 2, %s18
        %s181 = ssub.s32 3, %s180
        %p182 = scmp.lt.s32.totalorder %s181, 2
        %s183 = scalar_select %p182, %s181, 2
        %s184 = smul.u32 32, %s183
        %p185 = scmp.lt.s32.totalorder %s17, 1
        %s186 = scalar_select %p185, %s17, 1
        %p187 = scmp.lt.s32.totalorder %s180, 2
        %s188 = scalar_select %p187, %s180, 2
        %s189 = smul.addr %s186, 3
        %s190 = sadd.s32 %s188, %s189
        %s191 = smul.addr %s190, 2
        %s192 = scalar_lea.vmem %s0, %s191
        %s193 = smul.u32 2, %s18
        %s194 = ssub.s32 3, %s193
        %p195 = scmp.lt.s32.totalorder %s194, 2
        %s196 = scalar_select %p195, %s194, 2
        %s197 = smul.u32 32, %s196
      $region28: #{conv3x3.1} parent=23 // pred_fallthru
        _
      // Predicated region
      $region29: #{conv3x3.1} parent=23 // pred_check
        %p198 = pneg %p76
      $region30: #{conv3x3.1} parent=23 // pred_check_branch
        %200 = sbr.rel (%p198) target = $region32
      $region31: #{conv3x3.1} parent=23 // pred_region
        %s201 = sadd.s32 %s18, 1
        %s202 = smul.u32 %s201, 2
        %p203 = scmp.lt.s32.totalorder %s17, 1
        %s204 = scalar_select %p203, %s17, 1
        %p205 = scmp.lt.s32.totalorder %s202, 2
        %s206 = scalar_select %p205, %s202, 2
        %s207 = smul.addr %s204, 3
        %s208 = sadd.s32 %s206, %s207
        %s209 = smul.addr %s208, 2
        %s210 = scalar_lea.vmem %s1, %s209
        %s211 = sadd.s32 %s18, 1
        %s212 = smul.u32 %s211, 2
      $region32: #{conv3x3.1} parent=23 // pred_fallthru
        _
    $region24: #{conv3x3.1} parent=5 // pred_fallthru
      _
    %p213 = scmp.le.s32.totalorder 1, %s10
    %p214 = scmp.lt.s32.totalorder %s10, 3
    %p215 = pnand %p213, %p214
    %p216 = pneg %p215
    // Predicated region
    $region33: #{conv3x3.1} parent=5 // pred_check
      _
    $region34: #{conv3x3.1} parent=5 // pred_check_branch
      %218 = sbr.rel (%p215) target = $region36
    $region35: #{conv3x3.1} parent=5 // pred_region
      %s219 = ssub.s32 %s10, 1
      %s220 = smul.u32 2, %s20
      %s221 = ssub.s32 3, %s220
      %p222 = scmp.lt.s32.totalorder %s221, 2
      %s223 = scalar_select %p222, %s221, 2
      %s224 = smul.u32 32, %s223
      %p225 = scmp.lt.s32.totalorder %s19, 1
      %s226 = scalar_select %p225, %s19, 1
      %p227 = scmp.lt.s32.totalorder %s220, 2
      %s228 = scalar_select %p227, %s220, 2
      %s229 = smul.addr %s226, 3
      %s230 = sadd.s32 %s228, %s229
      %s231 = smul.addr %s230, 2
      %s232 = scalar_lea.vmem %s0, %s231
      %p233 = pneg %p50
      %p234 = pneg %p47
      %s235 = sadd.s32 %s20, 1
      %s236 = smul.u32 %s235, 2
      %p237 = scmp.lt.s32.totalorder %s19, 1
      %s238 = scalar_select %p237, %s19, 1
      %p239 = scmp.lt.s32.totalorder %s236, 2
      %s240 = scalar_select %p239, %s236, 2
      %s241 = smul.addr %s238, 3
      %s242 = sadd.s32 %s240, %s241
      %s243 = smul.addr %s242, 2
      %s244 = scalar_lea.vmem %s1, %s243
      %p245 = pneg %p82
      %p246 = pneg %p79
      %p247 = pneg %p103
      %p248 = pneg %p100
      %p249 = pneg %p124
      %p250 = pneg %p121
      %p251 = pneg %p152
      %p252 = pneg %p149
      %s253 = smul.u32 2, %s20
      %p254 = scmp.lt.s32.totalorder %s19, 1
      %s255 = scalar_select %p254, %s19, 1
      %p256 = scmp.lt.s32.totalorder %s253, 1
      %s257 = scalar_select %p256, %s253, 1
      %s258 = smul.addr %s255, 2
      %s259 = sadd.s32 %s257, %s258
      %s260 = smul.addr %s259, 8
      %s261 = scalar_lea.vmem %s4, %s260
      %s262 = smul.u32 2, %s20
      %s263 = ssub.s32 3, %s262
      %p264 = scmp.lt.s32.totalorder %s263, 2
      %s265 = scalar_select %p264, %s263, 2
      %s266 = smul.u32 32, %s265
      %p267 = scmp.lt.s32.totalorder %s19, 1
      %s268 = scalar_select %p267, %s19, 1
      %p269 = scmp.lt.s32.totalorder %s262, 2
      %s270 = scalar_select %p269, %s262, 2
      %s271 = smul.addr %s268, 3
      %s272 = sadd.s32 %s270, %s271
      %s273 = smul.addr %s272, 2
      %s274 = scalar_lea.vmem %s0, %s273
      %s275 = smul.u32 2, %s20
      %s276 = ssub.s32 3, %s275
      %p277 = scmp.lt.s32.totalorder %s276, 2
      %s278 = scalar_select %p277, %s276, 2
      %s279 = smul.u32 32, %s278
      %s280 = sadd.s32 %s20, 1
      %s281 = smul.u32 %s280, 2
      %p282 = scmp.lt.s32.totalorder %s19, 1
      %s283 = scalar_select %p282, %s19, 1
      %p284 = scmp.lt.s32.totalorder %s281, 2
      %s285 = scalar_select %p284, %s281, 2
      %s286 = smul.addr %s283, 3
      %s287 = sadd.s32 %s285, %s286
      %s288 = smul.addr %s287, 2
      %s289 = scalar_lea.vmem %s1, %s288
      %s290 = sadd.s32 %s20, 1
      %s291 = smul.u32 %s290, 2
      %s292 = smul.u32 2, %s20
      %p293 = scmp.lt.s32.totalorder %s19, 1
      %s294 = scalar_select %p293, %s19, 1
      %p295 = scmp.lt.s32.totalorder %s292, 1
      %s296 = scalar_select %p295, %s292, 1
      %s297 = smul.addr %s294, 2
      %s298 = sadd.s32 %s296, %s297
      %s299 = smul.addr %s298, 8
      %s300 = scalar_lea.vmem %s4, %s299
      %s301 = smul.u32 2, %s20
      %v303 = vld [vmem:[%s3] sm:$0xff]
      %v304 = vlaneseq
      %v305 = vand.u32 %v304, 127
      %306 = vrot.lane.b32.xlu0 %v305, 16
      %v307 = vpop.permute.xlu0 %306
      %308 = vrot.lane.b32.xlu0 %v305, 32
      %v309 = vpop.permute.xlu0 %308
      %310 = vrot.lane.b32.xlu0 %v305, 48
      %v311 = vpop.permute.xlu0 %310
      %312 = vrot.lane.b32.xlu0 %v305, 64
      %v313 = vpop.permute.xlu0 %312
      %314 = vrot.lane.b32.xlu0 %v305, 80
      %v315 = vpop.permute.xlu0 %314
      %316 = vrot.lane.b32.xlu0 %v305, 96
      %v317 = vpop.permute.xlu0 %316
      %318 = vrot.lane.b32.xlu0 %v305, 112
      %v319 = vpop.permute.xlu0 %318
      %vm320 = vcmask 130048
      %v321 = vsel %vm320, %v305, %v307
      %vm322 = vcmask 261120
      %v323 = vsel %vm322, %v321, %v309
      %vm324 = vcmask 392192
      %v325 = vsel %vm324, %v323, %v311
      %vm326 = vcmask 523264
      %v327 = vsel %vm326, %v325, %v313
      %vm328 = vcmask 654336
      %v329 = vsel %vm328, %v327, %v315
      %vm330 = vcmask 785408
      %v331 = vsel %vm330, %v329, %v317
      %vm332 = vcmask 916480
      %v333 = vsel %vm332, %v331, %v319
      %vm334 = vcmp.eq.s32.totalorder %v333, 0
      %vm335 = vcmp.eq.s32.totalorder %v333, 15
      %v336 = vld [vmem:[%s2] sm:$0xf]
      %v337 = vld [vmem:[%s274] sm:$0xf]
      %v340 = vunpack.c.l.s4 1983009808
      %v341 = vunpack.c.0.s8 %v340
      %v342 = vlaneseq
      %v343 = vshrl.u32 %v342, 7
      %v344 = vsub.s32 %v341, %v343
      %v345 = vrot.slane %v337, %v344
      %v346 = vcombine.high %v345, %v345
      %347 = vrot.lane.b32.xlu0 %v345, 1
      %v348 = vpop.permute.xlu0 %347
      %349 = vrot.lane.b32.xlu0 %v346, 1
      %v350 = vpop.permute.xlu0 %349
      %vm351 = vcmask 7168
      %v352 = vsel %vm351, %v348, %v350
      %vm354 = vcmask 7168
      %v357 = vsel %vm354, %v337, %v348
      %359 = vrot.lane.b32.xlu0 %v345, 127
      %v360 = vpop.permute.xlu0 %359
      %361 = vrot.lane.b32.xlu0 %v346, 127
      %v362 = vpop.permute.xlu0 %361
      %vm363 = vcmask 1039360
      %v364 = vsel %vm363, %v360, %v362
      %vm366 = vcmask 1039360
      %v369 = vsel %vm366, %v362, %v346
      %vm371 = vmpackc.low %vm334, %vm334
      %v372 = vsel %vm371, %v364, %v357
      %v373 = vsel %vm371, %v369, %v352
      %vm374 = vmpackc.low %vm335, %vm335
      %v375 = vsel %vm374, %v357, %v364
      %v376 = vsel %vm374, %v352, %v369
      %v377 = vld [vmem:[%s289] sm:$0x3]
      %378 = vrot.lane.b32.xlu0 %v345, 112
      %v379 = vpop.permute.xlu0 %378
      %380 = vrot.lane.b32.xlu0 %v346, 112
      %v381 = vpop.permute.xlu0 %380
      %vm382 = vcmask 916480
      %v383 = vsel %vm382, %v379, %v381
      %v386 = vunpack.c.l.s4 1983009808
      %v387 = vunpack.c.0.s8 %v386
      %v388 = vlaneseq
      %v389 = vshrl.u32 %v388, 7
      %v390 = vsub.s32 %v387, %v389
      %v391 = vrot.slane %v377, %v390
      %392 = vrot.lane.b32.xlu0 %v391, 112
      %v393 = vpop.permute.xlu0 %392
      %v396 = vsel %vm332, %v381, %v393
      %398 = vrot.lane.b32.xlu0 %v383, 1
      %v399 = vpop.permute.xlu0 %398
      %400 = vrot.lane.b32.xlu0 %v396, 1
      %v401 = vpop.permute.xlu0 %400
      %v402 = vsel %vm351, %v399, %v401
      %v406 = vsel %vm354, %v383, %v399
      %408 = vrot.lane.b32.xlu0 %v383, 127
      %v409 = vpop.permute.xlu0 %408
      %410 = vrot.lane.b32.xlu0 %v396, 127
      %v411 = vpop.permute.xlu0 %410
      %v412 = vsel %vm363, %v409, %v411
      %v415 = vsel %vm366, %v411, %v396
      %v417 = vsel %vm371, %v412, %v406
      %v418 = vsel %vm371, %v415, %v402
      %v419 = vsel %vm374, %v406, %v412
      %v420 = vsel %vm374, %v402, %v415
      %421 = vrot.lane.b32.xlu0 %v345, 96
      %v422 = vpop.permute.xlu0 %421
      %423 = vrot.lane.b32.xlu0 %v346, 96
      %v424 = vpop.permute.xlu0 %423
      %vm425 = vcmask 785408
      %v426 = vsel %vm425, %v422, %v424
      %427 = vrot.lane.b32.xlu0 %v391, 96
      %v428 = vpop.permute.xlu0 %427
      %v431 = vsel %vm330, %v424, %v428
      %433 = vrot.lane.b32.xlu0 %v426, 1
      %v434 = vpop.permute.xlu0 %433
      %435 = vrot.lane.b32.xlu0 %v431, 1
      %v436 = vpop.permute.xlu0 %435
      %v437 = vsel %vm351, %v434, %v436
      %v441 = vsel %vm354, %v426, %v434
      %443 = vrot.lane.b32.xlu0 %v426, 127
      %v444 = vpop.permute.xlu0 %443
      %445 = vrot.lane.b32.xlu0 %v431, 127
      %v446 = vpop.permute.xlu0 %445
      %v447 = vsel %vm363, %v444, %v446
      %v450 = vsel %vm366, %v446, %v431
      %v452 = vsel %vm371, %v447, %v441
      %v453 = vsel %vm371, %v450, %v437
      %v454 = vsel %vm374, %v441, %v447
      %v455 = vsel %vm374, %v437, %v450
      %v456 = vcombine.low %v337, %v337
      %v458 = vunpack.c.l.s4 1983009808
      %v459 = vunpack.c.0.s8 %v458
      %v460 = vlaneseq
      %v461 = vshrl.u32 %v460, 7
      %v462 = vsub.s32 %v459, %v461
      %v463 = vrot.slane %v456, %v462
      %v464 = vcombine.high %v463, %v463
      %v467 = vrot.slane %v375, 4
      %v468 = vrot.slane %v376, 4
      %v471 = vrot.slane %v417, 2
      %v472 = vrot.slane %v418, 2
      %v475 = vrot.slane %v419, 6
      %v476 = vrot.slane %v420, 6
      %v479 = vrot.slane %v452, 4
      %v480 = vrot.slane %v453, 4
      %v481 = vrot.slane %v426, 2
      %v482 = vrot.slane %v431, 2
      %vm483 = vcmask 1041408
      %v486 = vsel %vm483, %v372, %v463
      %v489 = vsel %vm483, %v373, %v464
      %vm490 = vcmask 1043456
      %v492 = vsel %vm490, %v486, %v467
      %v494 = vsel %vm490, %v489, %v468
      %vm495 = vcmask 1045504
      %v497 = vsel %vm495, %v492, %v471
      %v500 = vsel %vm495, %v494, %v472
      %v503 = vsel %vm483, %v383, %v475
      %v505 = vsel %vm483, %v396, %v476
      %v507 = vsel %vm490, %v503, %v479
      %v509 = vsel %vm490, %v505, %v480
      %v511 = vsel %vm495, %v507, %v481
      %v514 = vsel %vm495, %v509, %v482
      %517 = vset.pattern.permute.xlu0 0
      %518 = vperm.xlu0 %517, %v303
      %v519 = vpop.permute.xlu0 %518
      %vm521 = vcmask 293888
      %v523 = vsel %vm521, %v336, 0
      %v526 = vsel %vm483, %v454, 0
      %v529 = vsel %vm483, %v455, 0
      %531 = vmatprep.subr.bf16.mxu0 %v500
      %532 = vmatpush1.bf16.msra.mxu0 %v497
      %533 = vmatprep.subr.bf16.mxu0 %v514
      %534 = vmatpush1.bf16.msra.mxu0 %v511
      %535 = vmatprep.subr.bf16.mxu0 %v529
      %536 = vmatpush1.bf16.msra.mxu0 %v526
      %537 = vmatprep.subr.bf16.mxu0 0
      %538 = vmatpush1.bf16.msra.mxu0 0
      %539 = vmatprep.subr.bf16.mxu0 0
      %540 = vmatpush1.bf16.msra.mxu0 0
      %541 = vmatprep.subr.bf16.mxu0 0
      %542 = vmatpush1.bf16.msra.mxu0 0
      %543 = vmatprep.subr.bf16.mxu0 0
      %544 = vmatpush1.bf16.msra.mxu0 0
      %545 = vmatprep.subr.bf16.mxu0 0
      %546 = vmatpush1.bf16.msra.mxu0 0
      %547 = vmatprep.subr.bf16.mxu0 0
      %548 = vmatpush1.bf16.msra.mxu0 0
      %549 = vmatprep.subr.bf16.mxu0 0
      %550 = vmatpush1.bf16.msra.mxu0 0
      %551 = vmatprep.subr.bf16.mxu0 0
      %552 = vmatpush1.bf16.msra.mxu0 0
      %553 = vmatprep.subr.bf16.mxu0 0
      %554 = vmatpush1.bf16.msra.mxu0 0
      %555 = vmatprep.subr.bf16.mxu0 0
      %556 = vmatpush1.bf16.msra.mxu0 0
      %557 = vmatprep.subr.bf16.mxu0 0
      %558 = vmatpush1.bf16.msra.mxu0 0
      %559 = vmatprep.subr.bf16.mxu0 0
      %560 = vmatpush1.bf16.msra.mxu0 0
      %561 = vmatprep.subr.bf16.mxu0 0
      %562 = vmatpush1.bf16.msra.mxu0 0
      %563 = vmatprep.mubr.bf16.mxu0 0
      %564 = vmatmul.mubr.bf16.gmra.mrb[0].mxu0 %v523
      %v565 = vpop.f32.mrb[0].mxu0
      %v566 = vadd.f32 %v519, %v565
      %v567 = vpop.f32.mrb[0].mxu0
      %v568 = vadd.f32 %v519, %v567
      %v569 = vpop.f32.mrb[0].mxu0
      %v570 = vpop.f32.mrb[0].mxu0
      %571 = vdwg.mxu0
      %572 = vst [vmem:[%s300] sm:$0xff] %v566
      %573 = vst [vmem:[%s300 + $0x8] sm:$0xff] %v568
      %s574 = smul.u32 2, %s20
      %p575 = scmp.lt.s32.totalorder %s19, 1
      %s576 = scalar_select %p575, %s19, 1
      %p577 = scmp.lt.s32.totalorder %s574, 1
      %s578 = scalar_select %p577, %s574, 1
      %s579 = smul.addr %s576, 2
      %s580 = sadd.s32 %s578, %s579
      %s581 = smul.addr %s580, 8
      %s582 = scalar_lea.vmem %s4, %s581
      // Predicated region
      $region37: #{conv3x3.1} parent=35 // pred_check
        %p583 = pneg %p149
      $region38: #{conv3x3.1} parent=35 // pred_check_branch
        %585 = sbr.rel (%p583) target = $region40
      $region39: #{conv3x3.1} parent=35 // pred_region
        %s586 = smul.u32 2, %s20
      $region40: #{conv3x3.1} parent=35 // pred_fallthru
        _
    $region36: #{conv3x3.1} parent=5 // pred_fallthru
      _
    %p587 = scmp.le.s32.totalorder 2, %s10
    // Predicated region
    $region41: #{conv3x3.1} parent=5 // pred_check
      %p588 = pneg %p587
    $region42: #{conv3x3.1} parent=5 // pred_check_branch
      %590 = sbr.rel (%p588) target = $region44
    $region43: #{conv3x3.1} parent=5 // pred_region
      %s591 = ssub.s32 %s10, 2
      // Predicated region
      $region45: #{conv3x3.1} parent=43 // pred_check
        %p592 = pneg %p155
      $region46: #{conv3x3.1} parent=43 // pred_check_branch
        %594 = sbr.rel (%p592) target = $region48
      $region47: #{conv3x3.1} parent=43 // pred_region
        %s595 = smul.u32 2, %s22
        %p596 = scmp.lt.s32.totalorder %s21, 1
        %s597 = scalar_select %p596, %s21, 1
        %p598 = scmp.lt.s32.totalorder %s595, 1
        %s599 = scalar_select %p598, %s595, 1
        %s600 = smul.addr %s597, 2
        %s601 = sadd.s32 %s599, %s600
        %s602 = smul.addr %s601, 8
        %s603 = scalar_lea.vmem %s4, %s602
      $region48: #{conv3x3.1} parent=43 // pred_fallthru
        _
    $region44: #{conv3x3.1} parent=5 // pred_fallthru
      _
  $region6: #{conv3x3.1} parent=0 // loop_footer
    %s14 = sadd.s32 1, %s10
  $region7: #{conv3x3.1} parent=0 // loop_footer_branch
    %9 = sbr.rel target = $region3
  $region8: #{conv3x3.1} parent=0 // loop_exit
    _

</llo_original>
